<compile_context>
chip_gen: v5e
topology: v5e:2x2
jax: 0.10.0
libtpu: 0.0.40
codegen_flags: <defaults>
</compile_context>

<pallas_src>
import functools

import jax
import jax.numpy as jnp
from jax.experimental import pallas as pl
from jax.experimental.pallas import tpu as pltpu

S_SIZE = 19 + 4   # 23
H_SIZE = 32
A_SIZE = 1


def _round_up(n, m):
    return ((n + m - 1) // m) * m


def _mlp_kernel(x_ref, w1_ref, b1_ref, w2_ref, b2_ref, o_ref):
    # x_ref : (S_pad, BT)  -- batch on the lane axis
    # w1_ref: (H, S_pad)   -- fc1.weight layout (out, in), zero-padded along S
    # b1_ref: (H, 1)
    # w2_ref: (H, 1)       -- fc2.weight transposed, broadcasts along lanes
    # b2_ref: (1, 1)
    # o_ref : (1, BT)      -- lane-dense output tile
    h = jnp.dot(w1_ref[...], x_ref[...], preferred_element_type=jnp.float32)  # (H, BT)
    h = jnp.maximum(h + b1_ref[...], 0.0)
    # fc2: M=1 matmul replaced by VPU multiply + cross-sublane (XLU) reduce.
    y = jnp.sum(h * w2_ref[...], axis=0, keepdims=True) + b2_ref[...]         # (1, BT)
    o_ref[...] = jax.nn.sigmoid(y).astype(o_ref.dtype)


@functools.partial(jax.jit, static_argnames=("block_b",))
def agent_forward(x, w1, b1, w2, b2, *, block_b=256):
    """x: (B, S_SIZE) f32. Weights use PyTorch nn.Linear layouts:
    w1: (H, S) = fc1.weight, b1: (H,), w2: (A, H) = fc2.weight, b2: (A,).
    Returns (B, A_SIZE) f32 == sigmoid(relu(x @ w1.T + b1) @ w2.T + b2)."""
    B, S = x.shape
    H = w1.shape[0]
    A = w2.shape[0]

    # Host-side layout plumbing (fused by XLA, not inside the kernel):
    s_pad = (-S) % 8                         # 23 -> 24 sublanes
    bt = min(block_b, _round_up(B, 128))     # lane tile: 128-aligned, up to 256
    b_pad = (-B) % bt
    Sp, Bp = S + s_pad, B + b_pad

    xt = jnp.pad(x.T, ((0, s_pad), (0, b_pad)))   # (Sp, Bp), batch on lanes
    w1p = jnp.pad(w1, ((0, 0), (0, s_pad)))       # (H, Sp), zero K-padding
    b1c = b1.reshape(H, 1)
    w2c = w2.reshape(A, H).T                      # (H, 1)
    b2c = b2.reshape(A, 1)

    out = pl.pallas_call(
        _mlp_kernel,
        out_shape=jax.ShapeDtypeStruct((A, Bp), jnp.float32),
        grid_spec=pltpu.PrefetchScalarGridSpec(
            num_scalar_prefetch=0,
            grid=(Bp // bt,),
            in_specs=[
                pl.BlockSpec((Sp, bt), lambda i: (0, i)),   # activations: tiled over batch
                pl.BlockSpec((H, Sp), lambda i: (0, 0)),    # weights stay VMEM-resident
                pl.BlockSpec((H, 1), lambda i: (0, 0)),
                pl.BlockSpec((H, A), lambda i: (0, 0)),
                pl.BlockSpec((A, 1), lambda i: (0, 0)),
            ],
            out_specs=pl.BlockSpec((A, bt), lambda i: (0, i)),
        ),
        compiler_params=pltpu.CompilerParams(
            dimension_semantics=("parallel",)),   # v7x: batch tiles split across both TCs
    )(xt, w1p, b1c, w2c, b2c)

    return out[:, :B].T   # (B, A)


def init_params(key):
    """Deterministic init mimicking PyTorch nn.Linear defaults
    (uniform in [-1/sqrt(fan_in), 1/sqrt(fan_in)]), PyTorch weight layouts."""
    k1, k2, k3, k4 = jax.random.split(key, 4)
    bound1 = 1.0 / jnp.sqrt(jnp.float32(S_SIZE))
    bound2 = 1.0 / jnp.sqrt(jnp.float32(H_SIZE))
    w1 = jax.random.uniform(k1, (H_SIZE, S_SIZE), jnp.float32, -bound1, bound1)  # fc1.weight
    b1 = jax.random.uniform(k2, (H_SIZE,), jnp.float32, -bound1, bound1)         # fc1.bias
    w2 = jax.random.uniform(k3, (A_SIZE, H_SIZE), jnp.float32, -bound2, bound2)  # fc2.weight
    b2 = jax.random.uniform(k4, (A_SIZE,), jnp.float32, -bound2, bound2)         # fc2.bias
    return w1, b1, w2, b2


if __name__ == "__main__":
    key = jax.random.PRNGKey(0)
    kx, kp = jax.random.split(key)

    # B = 384 exercises both batch padding (-> 512) and a 2-step parallel grid
    # of 256-lane tiles.  (The PyTorch module runs B=1 per call; batching many
    # states per call is what makes a standalone kernel worthwhile here.)
    B = 384
    x = jax.random.normal(kx, (B, S_SIZE), dtype=jnp.float32)
    w1, b1, w2, b2 = init_params(kp)

    out = agent_forward(x, w1, b1, w2, b2)
    out = jax.block_until_ready(out)

    # Reference check in plain JAX (same math as the PyTorch forward).
    ref = jax.nn.sigmoid(jnp.maximum(x @ w1.T + b1, 0.0) @ w2.T + b2)
    assert out.shape == (B, A_SIZE)
    assert jnp.allclose(out, ref, atol=1e-5, rtol=1e-5), float(jnp.max(jnp.abs(out - ref)))

    print("KERNEL_OK")
</pallas_src>

<mosaic_0001>
module attributes {stable_mosaic.version = 11 : i64} {
  func.func @_mlp_kernel(%arg0: i32, %arg1: memref<24x256xf32, #tpu.memory_space<vmem>>, %arg2: memref<32x24xf32, #tpu.memory_space<vmem>>, %arg3: memref<32x1xf32, #tpu.memory_space<vmem>>, %arg4: memref<32x1xf32, #tpu.memory_space<vmem>>, %arg5: memref<1x1xf32, #tpu.memory_space<vmem>>, %arg6: memref<1x256xf32, #tpu.memory_space<vmem>>) attributes {dimension_semantics = [#tpu.dimension_semantics<parallel>], iteration_bounds = array<i64: 2>, scalar_prefetch = 0 : i64, scratch_operands = 0 : i64, tpu.core_type = #tpu.core_type<tc>, window_params = [{transform_indices = @transform_0, window_bounds = array<i64: 24, 256>}, {pipeline_mode = #tpu.pipeline_mode<synchronous>, transform_indices = @transform_1, window_bounds = array<i64: 32, 24>}, {pipeline_mode = #tpu.pipeline_mode<synchronous>, transform_indices = @transform_2, window_bounds = array<i64: 32, 1>}, {pipeline_mode = #tpu.pipeline_mode<synchronous>, transform_indices = @transform_3, window_bounds = array<i64: 32, 1>}, {pipeline_mode = #tpu.pipeline_mode<synchronous>, transform_indices = @transform_4, window_bounds = array<i64: 1, 1>}, {transform_indices = @transform_5, window_bounds = array<i64: 1, 256>}]} {
    %c0 = arith.constant 0 : index
    %c0_0 = arith.constant 0 : index
    %0 = vector.load %arg2[%c0, %c0_0] : memref<32x24xf32, #tpu.memory_space<vmem>>, vector<32x24xf32>
    %c0_1 = arith.constant 0 : index
    %c0_2 = arith.constant 0 : index
    %1 = vector.load %arg1[%c0_1, %c0_2] : memref<24x256xf32, #tpu.memory_space<vmem>>, vector<24x256xf32>
    %cst = arith.constant dense<0.000000e+00> : vector<32x256xf32>
    %2 = tpu.matmul %0, %1, %cst {dimension_numbers = #tpu.dot_dimension_numbers<[1], [0], [0], [1], [0, 0, 1, 1], [], []>} : vector<32x24xf32>, vector<24x256xf32>, vector<32x256xf32> -> vector<32x256xf32>
    %c0_3 = arith.constant 0 : index
    %c0_4 = arith.constant 0 : index
    %3 = vector.load %arg3[%c0_3, %c0_4] : memref<32x1xf32, #tpu.memory_space<vmem>>, vector<32x1xf32>
    %4 = vector.broadcast %3 : vector<32x1xf32> to vector<32x256xf32>
    %5 = arith.addf %2, %4 : vector<32x256xf32>
    %cst_5 = arith.constant 0.000000e+00 : f32
    %6 = vector.broadcast %cst_5 : f32 to vector<32x256xf32>
    %7 = arith.maximumf %5, %6 : vector<32x256xf32>
    %c0_6 = arith.constant 0 : index
    %c0_7 = arith.constant 0 : index
    %8 = vector.load %arg4[%c0_6, %c0_7] : memref<32x1xf32, #tpu.memory_space<vmem>>, vector<32x1xf32>
    %9 = vector.broadcast %8 : vector<32x1xf32> to vector<32x256xf32>
    %10 = arith.mulf %7, %9 : vector<32x256xf32>
    %cst_8 = arith.constant dense<0.000000e+00> : vector<256xf32>
    %11 = vector.multi_reduction <add>, %10, %cst_8 [0] : vector<32x256xf32> to vector<256xf32>
    %12 = vector.shape_cast %11 : vector<256xf32> to vector<1x256xf32>
    %c0_9 = arith.constant 0 : index
    %c0_10 = arith.constant 0 : index
    %13 = vector.load %arg5[%c0_9, %c0_10] : memref<1x1xf32, #tpu.memory_space<vmem>>, vector<1x1xf32>
    %14 = vector.broadcast %13 : vector<1x1xf32> to vector<1x256xf32>
    %15 = arith.addf %12, %14 : vector<1x256xf32>
    %16 = arith.negf %15 : vector<1x256xf32>
    %17 = math.exp %16 : vector<1x256xf32>
    %cst_11 = arith.constant 1.000000e+00 : f32
    %18 = vector.broadcast %cst_11 : f32 to vector<1x256xf32>
    %19 = arith.addf %18, %17 : vector<1x256xf32>
    %20 = arith.divf %18, %19 : vector<1x256xf32>
    %c0_12 = arith.constant 0 : index
    %c0_13 = arith.constant 0 : index
    %21 = vector.load %arg6[%c0_12, %c0_13] : memref<1x256xf32, #tpu.memory_space<vmem>>, vector<1x256xf32>
    tpu.vector_store %arg6[%c0_12, %c0_13], %20 {strides = array<i32>} : memref<1x256xf32, #tpu.memory_space<vmem>>, vector<1x256xf32>,
    return
  }
  func.func @transform_0(%arg0: i32) -> (i32, i32) {
    %c0_i32 = arith.constant 0 : i32
    %c0_i32_0 = arith.constant 0 : i32
    return %c0_i32, %arg0 : i32, i32
  }
  func.func @transform_1(%arg0: i32) -> (i32, i32) {
    %c0_i32 = arith.constant 0 : i32
    %c0_i32_0 = arith.constant 0 : i32
    %c0_i32_1 = arith.constant 0 : i32
    return %c0_i32, %c0_i32_0 : i32, i32
  }
  func.func @transform_2(%arg0: i32) -> (i32, i32) {
    %c0_i32 = arith.constant 0 : i32
    %c0_i32_0 = arith.constant 0 : i32
    %c0_i32_1 = arith.constant 0 : i32
    return %c0_i32, %c0_i32_0 : i32, i32
  }
  func.func @transform_3(%arg0: i32) -> (i32, i32) {
    %c0_i32 = arith.constant 0 : i32
    %c0_i32_0 = arith.constant 0 : i32
    %c0_i32_1 = arith.constant 0 : i32
    return %c0_i32, %c0_i32_0 : i32, i32
  }
  func.func @transform_4(%arg0: i32) -> (i32, i32) {
    %c0_i32 = arith.constant 0 : i32
    %c0_i32_0 = arith.constant 0 : i32
    %c0_i32_1 = arith.constant 0 : i32
    return %c0_i32, %c0_i32_0 : i32, i32
  }
  func.func @transform_5(%arg0: i32) -> (i32, i32) {
    %c0_i32 = arith.constant 0 : i32
    %c0_i32_0 = arith.constant 0 : i32
    return %c0_i32, %arg0 : i32, i32
  }
}

</mosaic_0001>

<llo_original>
// kernel: agent_forward.1
$region0: #{agent_forward.1}
  #allocation0 [shape = 'u32[]', space=smem, size = 0x4, offset = 0x4, fixed_abs, tag = 'smem constant byte address 0x4 - core index']
  #allocation1 [shape = 'u32[72,128]{1,0:T(1,128)}', space=vmem, size = 0x9000, scoped, tag = 'internal scratch']
  #allocation2 [shape = 'f32[1,1]{1,0:T(1,128)S(1)}', space=vmem, size = 0x200, scoped, tag = 'scoped memory for agent_forward.1']
  %s0 = inlined_call_operand.vmem [shape: f32[24,512], index: 0, kind: input, shape index: {}]
  %s1 = inlined_call_operand.vmem [shape: f32[32,24], index: 1, kind: input, shape index: {}]
  %s2 = inlined_call_operand.vmem [shape: f32[32,1], index: 2, kind: input, shape index: {}]
  %s3 = inlined_call_operand.vmem [shape: f32[32,1], index: 3, kind: input, shape index: {}]
  %s4 = inlined_call_operand.<no memory space> [shape: f32[1,1], index: 4, kind: input, shape index: {}]
  %s5 = inlined_call_operand.vmem [shape: f32[1,512], index: 5, kind: output, shape index: {}]
  %s6 = sld [smem:[#allocation0]]
  $region76: #{agent_forward.1} parent=0
    _
  %s8 = ssub.s32 1, %s6
  %s9 = scalar_select 0, %s8, %s6
  %v10 = vstv %s4
  %11 = vst [vmem:[#allocation2] sm:$0x1] %v10
  $region1: #{agent_forward.1} parent=0
    #allocation3 [shape = 'u8[49152]{0}', space=vmem, size = 0xc000, scoped, tag = 'input window, operand 0']
    loop: start=0, step=1, limit=4
    $region2: #{agent_forward.1} parent=1 // loop_pre_header
      _
    $region3: #{agent_forward.1} parent=1 // loop_header
      %s13 = sphi 0, %s17
      %p14 = scmp.ge.s32.totalorder %s13, 4
      %s23 = sphi 0, %s25
      %s26 = sphi 0, %s23
      %s27 = sphi 0, %s26
      %s43 = sphi 0, %s27
      %s47 = sphi 0, %s47
      %s49 = sphi 0, %s47
      %s50 = sphi 0, %s49
      %s64 = sphi 0, %s50
      %s68 = sphi 0, %s68
      %s70 = sphi 0, %s68
      %s71 = sphi 0, %s70
      %s85 = sphi 0, %s71
      %s89 = sphi 0, %s89
      %s91 = sphi 0, %s89
      %s92 = sphi 0, %s91
      %s106 = sphi 0, %s92
      %s110 = sphi 0, %s110
      %s112 = sphi 0, %s110
      %s113 = sphi 0, %s112
      %s127 = sphi 0, %s113
      %s133 = sphi 0, %s135
      %s136 = sphi 0, %s133
      %s137 = sphi 0, %s136
      %s153 = sphi 0, %s137
    $region4: #{agent_forward.1} parent=1 // loop_header_branch
      %16 = sbr.rel (%p14) target = $region8
    $region5: #{agent_forward.1} parent=1 // loop_body
      %s18 = ssub.s32 %s13, 1
      %s19 = ssub.s32 %s13, 2
      %s20 = sadd.s32 %s13, 1
      %s21 = ssub.s32 %s13, %s20
      %p22 = scmp.eq.s32.totalorder %s21, 0
      %s24 = sadd.s32 %s23, 1
      %s25 = scalar_select %p22, %s23, %s24
      %p28 = pneg %p22
      %p29 = scmp.eq.s32.totalorder %s13, 1
      %p30 = por %p28, %p29
      %p31 = scmp.ne.s32.totalorder %s23, %s26
      %p32 = scmp.eq.s32.totalorder %s13, 0
      %p33 = por %p31, %p32
      %p34 = scmp.ne.s32.totalorder %s23, %s26
      %p35 = scmp.eq.s32.totalorder %s18, 1
      %p36 = por %p34, %p35
      %p37 = scmp.ne.s32.totalorder %s26, %s27
      %p38 = scmp.eq.s32.totalorder %s18, 0
      %p39 = por %p37, %p38
      %p40 = scmp.ne.s32.totalorder %s26, %s27
      %p41 = scmp.eq.s32.totalorder %s19, 1
      %p42 = por %p40, %p41
      %p44 = scmp.ne.s32.totalorder %s27, %s43
      %p45 = scmp.eq.s32.totalorder %s19, 0
      %p46 = por %p44, %p45
      %s48 = sadd.s32 %s47, 1
      %p51 = scmp.eq.s32.totalorder %s13, 1
      %p52 = scmp.ne.s32.totalorder %s47, %s49
      %p53 = scmp.eq.s32.totalorder %s13, 0
      %p54 = por %p52, %p53
      %p55 = scmp.ne.s32.totalorder %s47, %s49
      %p56 = scmp.eq.s32.totalorder %s18, 1
      %p57 = por %p55, %p56
      %p58 = scmp.ne.s32.totalorder %s49, %s50
      %p59 = scmp.eq.s32.totalorder %s18, 0
      %p60 = por %p58, %p59
      %p61 = scmp.ne.s32.totalorder %s49, %s50
      %p62 = scmp.eq.s32.totalorder %s19, 1
      %p63 = por %p61, %p62
      %p65 = scmp.ne.s32.totalorder %s50, %s64
      %p66 = scmp.eq.s32.totalorder %s19, 0
      %p67 = por %p65, %p66
      %s69 = sadd.s32 %s68, 1
      %p72 = scmp.eq.s32.totalorder %s13, 1
      %p73 = scmp.ne.s32.totalorder %s68, %s70
      %p74 = scmp.eq.s32.totalorder %s13, 0
      %p75 = por %p73, %p74
      %p76 = scmp.ne.s32.totalorder %s68, %s70
      %p77 = scmp.eq.s32.totalorder %s18, 1
      %p78 = por %p76, %p77
      %p79 = scmp.ne.s32.totalorder %s70, %s71
      %p80 = scmp.eq.s32.totalorder %s18, 0
      %p81 = por %p79, %p80
      %p82 = scmp.ne.s32.totalorder %s70, %s71
      %p83 = scmp.eq.s32.totalorder %s19, 1
      %p84 = por %p82, %p83
      %p86 = scmp.ne.s32.totalorder %s71, %s85
      %p87 = scmp.eq.s32.totalorder %s19, 0
      %p88 = por %p86, %p87
      %s90 = sadd.s32 %s89, 1
      %p93 = scmp.eq.s32.totalorder %s13, 1
      %p94 = scmp.ne.s32.totalorder %s89, %s91
      %p95 = scmp.eq.s32.totalorder %s13, 0
      %p96 = por %p94, %p95
      %p97 = scmp.ne.s32.totalorder %s89, %s91
      %p98 = scmp.eq.s32.totalorder %s18, 1
      %p99 = por %p97, %p98
      %p100 = scmp.ne.s32.totalorder %s91, %s92
      %p101 = scmp.eq.s32.totalorder %s18, 0
      %p102 = por %p100, %p101
      %p103 = scmp.ne.s32.totalorder %s91, %s92
      %p104 = scmp.eq.s32.totalorder %s19, 1
      %p105 = por %p103, %p104
      %p107 = scmp.ne.s32.totalorder %s92, %s106
      %p108 = scmp.eq.s32.totalorder %s19, 0
      %p109 = por %p107, %p108
      %s111 = sadd.s32 %s110, 1
      %p114 = scmp.eq.s32.totalorder %s13, 1
      %p115 = scmp.ne.s32.totalorder %s110, %s112
      %p116 = scmp.eq.s32.totalorder %s13, 0
      %p117 = por %p115, %p116
      %p118 = scmp.ne.s32.totalorder %s110, %s112
      %p119 = scmp.eq.s32.totalorder %s18, 1
      %p120 = por %p118, %p119
      %p121 = scmp.ne.s32.totalorder %s112, %s113
      %p122 = scmp.eq.s32.totalorder %s18, 0
      %p123 = por %p121, %p122
      %p124 = scmp.ne.s32.totalorder %s112, %s113
      %p125 = scmp.eq.s32.totalorder %s19, 1
      %p126 = por %p124, %p125
      %p128 = scmp.ne.s32.totalorder %s113, %s127
      %p129 = scmp.eq.s32.totalorder %s19, 0
      %p130 = por %p128, %p129
      %s131 = ssub.s32 %s13, %s20
      %p132 = scmp.eq.s32.totalorder %s131, 0
      %s134 = sadd.s32 %s133, 1
      %s135 = scalar_select %p132, %s133, %s134
      %p138 = pneg %p132
      %p139 = scmp.eq.s32.totalorder %s13, 1
      %p140 = por %p138, %p139
      %p141 = scmp.ne.s32.totalorder %s133, %s136
      %p142 = scmp.eq.s32.totalorder %s13, 0
      %p143 = por %p141, %p142
      %p144 = scmp.ne.s32.totalorder %s133, %s136
      %p145 = scmp.eq.s32.totalorder %s18, 1
      %p146 = por %p144, %p145
      %p147 = scmp.ne.s32.totalorder %s136, %s137
      %p148 = scmp.eq.s32.totalorder %s18, 0
      %p149 = por %p147, %p148
      %p150 = scmp.ne.s32.totalorder %s136, %s137
      %p151 = scmp.eq.s32.totalorder %s19, 1
      %p152 = por %p150, %p151
      %p154 = scmp.ne.s32.totalorder %s137, %s153
      %p155 = scmp.eq.s32.totalorder %s19, 0
      %p156 = por %p154, %p155
      %p157 = scmp.le.s32.totalorder 1, %s13
      %p158 = scmp.lt.s32.totalorder %s13, 3
      %p159 = pnand %p157, %p158
      %p160 = pneg %p159
      // Predicated region
      $region9: #{agent_forward.1} parent=5 // pred_check
        _
      $region10: #{agent_forward.1} parent=5 // pred_check_branch
        %162 = sbr.rel (%p159) target = $region12
      $region11: #{agent_forward.1} parent=5 // pred_region
        %s163 = ssub.s32 %s13, 1
        // Predicated region
        $region13: #{agent_forward.1} parent=11 // pred_check
          %p164 = pneg %p60
        $region14: #{agent_forward.1} parent=11 // pred_check_branch
          %166 = sbr.rel (%p164) target = $region16
        $region15: #{agent_forward.1} parent=11 // pred_region
          _
        $region16: #{agent_forward.1} parent=11 // pred_fallthru
          _
        // Predicated region
        $region17: #{agent_forward.1} parent=11 // pred_check
          %p167 = pneg %p81
        $region18: #{agent_forward.1} parent=11 // pred_check_branch
          %169 = sbr.rel (%p167) target = $region20
        $region19: #{agent_forward.1} parent=11 // pred_region
          _
        $region20: #{agent_forward.1} parent=11 // pred_fallthru
          _
        // Predicated region
        $region21: #{agent_forward.1} parent=11 // pred_check
          %p170 = pneg %p102
        $region22: #{agent_forward.1} parent=11 // pred_check_branch
          %172 = sbr.rel (%p170) target = $region24
        $region23: #{agent_forward.1} parent=11 // pred_region
          _
        $region24: #{agent_forward.1} parent=11 // pred_fallthru
          _
        // Predicated region
        $region25: #{agent_forward.1} parent=11 // pred_check
          %p173 = pneg %p123
        $region26: #{agent_forward.1} parent=11 // pred_check_branch
          %175 = sbr.rel (%p173) target = $region28
        $region27: #{agent_forward.1} parent=11 // pred_region
          _
        $region28: #{agent_forward.1} parent=11 // pred_fallthru
          _
      $region12: #{agent_forward.1} parent=5 // pred_fallthru
        _
      %p176 = scmp.lt.s32.totalorder %s13, 2
      // Predicated region
      $region29: #{agent_forward.1} parent=5 // pred_check
        %p177 = pneg %p176
      $region30: #{agent_forward.1} parent=5 // pred_check_branch
        %179 = sbr.rel (%p177) target = $region32
      $region31: #{agent_forward.1} parent=5 // pred_region
        // Predicated region
        $region33: #{agent_forward.1} parent=31 // pred_check
          %p180 = pneg %p33
        $region34: #{agent_forward.1} parent=31 // pred_check_branch
          %182 = sbr.rel (%p180) target = $region36
        $region35: #{agent_forward.1} parent=31 // pred_region
          %s183 = sand.u32 %s23, 1
          %s184 = sand.u32 %s23, 1
          %s185 = smul.addr %s184, 48
          %s186 = scalar_lea.vmem [#allocation3], %s185
          %s187 = smul.u32 2, %s13
          %s188 = smul.addr %s187, 8
          %s189 = scalar_lea.vmem %s0, %s188
          // Predicated region
          $region37: #{agent_forward.1} parent=35 // pred_check
            _
          $region38: #{agent_forward.1} parent=35 // pred_check_branch
            %191 = sbr.rel (0) target = $region40
          $region39: #{agent_forward.1} parent=35 // pred_region
            // Predicated region
            $region41: #{agent_forward.1} parent=39 // pred_check
              _
            $region42: #{agent_forward.1} parent=39 // pred_check_branch
              %193 = sbr.rel (0) target = $region44
            $region43: #{agent_forward.1} parent=39 // pred_region
              loop: start=0, step=1, limit=1
              $region45: #{agent_forward.1} parent=43 // loop_pre_header
                _
              $region46: #{agent_forward.1} parent=43 // loop_header
                %s195 = sphi 0, %s199
                %p196 = scmp.ge.s32.totalorder %s195, 1
                %s200 = sphi %s189, %s189
                %s201 = sphi %s186, %s186
              $region47: #{agent_forward.1} parent=43 // loop_header_branch
                %198 = sbr.rel (%p196) target = $region51
              $region48: #{agent_forward.1} parent=43 // loop_body
                %v202 = vld [vmem:[%s200] sm:$0xff]
                %203 = vst [vmem:[%s201] sm:$0xff] %v202
                %v204 = vld [vmem:[%s200 + $0x8] sm:$0xff]
                %205 = vst [vmem:[%s201 + $0x8] sm:$0xff] %v204
                %v206 = vld [vmem:[%s200 + $0x20] sm:$0xff]
                %207 = vst [vmem:[%s201 + $0x10] sm:$0xff] %v206
                %v208 = vld [vmem:[%s200 + $0x28] sm:$0xff]
                %209 = vst [vmem:[%s201 + $0x18] sm:$0xff] %v208
                %v210 = vld [vmem:[%s200 + $0x40] sm:$0xff]
                %211 = vst [vmem:[%s201 + $0x20] sm:$0xff] %v210
                %v212 = vld [vmem:[%s200 + $0x48] sm:$0xff]
                %213 = vst [vmem:[%s201 + $0x28] sm:$0xff] %v212
              $region49: #{agent_forward.1} parent=43 // loop_footer
                %s199 = sadd.s32 1, %s195
              $region50: #{agent_forward.1} parent=43 // loop_footer_branch
                %194 = sbr.rel target = $region46
              $region51: #{agent_forward.1} parent=43 // loop_exit
                _
            $region44: #{agent_forward.1} parent=39 // pred_fallthru
              _
            // Predicated region
            $region52: #{agent_forward.1} parent=39 // pred_check
              _
            $region53: #{agent_forward.1} parent=39 // pred_check_branch
              %215 = sbr.rel target = $region55
            $region54: #{agent_forward.1} parent=39 // pred_region
              _
            $region55: #{agent_forward.1} parent=39 // pred_fallthru
              _
          $region40: #{agent_forward.1} parent=35 // pred_fallthru
            _
          %216 = vnop
        $region36: #{agent_forward.1} parent=31 // pred_fallthru
          _
      $region32: #{agent_forward.1} parent=5 // pred_fallthru
        _
      %p217 = scmp.le.s32.totalorder 1, %s13
      %p218 = scmp.lt.s32.totalorder %s13, 3
      %p219 = pnand %p217, %p218
      %p220 = pneg %p219
      // Predicated region
      $region56: #{agent_forward.1} parent=5 // pred_check
        _
      $region57: #{agent_forward.1} parent=5 // pred_check_branch
        %222 = sbr.rel (%p219) target = $region59
      $region58: #{agent_forward.1} parent=5 // pred_region
        %s223 = ssub.s32 %s13, 1
        %s224 = sand.u32 %s26, 1
        %s225 = sand.u32 %s26, 1
        %s226 = smul.addr %s225, 48
        %s227 = scalar_lea.vmem [#allocation3], %s226
        // Predicated region
        $region60: #{agent_forward.1} parent=58 // pred_check
          %p228 = pneg %p39
        $region61: #{agent_forward.1} parent=58 // pred_check_branch
          %230 = sbr.rel (%p228) target = $region63
        $region62: #{agent_forward.1} parent=58 // pred_region
          _
        $region63: #{agent_forward.1} parent=58 // pred_fallthru
          _
        %s231 = sand.u32 %s26, 1
        %s232 = sand.u32 %s26, 1
        %s233 = smul.addr %s232, 48
        %s234 = scalar_lea.vmem [#allocation3], %s233
        %p235 = pneg %p39
        %p236 = pneg %p36
        %p237 = pneg %p60
        %p238 = pneg %p57
        %p239 = pneg %p81
        %p240 = pneg %p78
        %p241 = pneg %p102
        %p242 = pneg %p99
        %p243 = pneg %p123
        %p244 = pneg %p120
        %p245 = pneg %p149
        %p246 = pneg %p146
        %s247 = smul.u32 2, %s18
        %p248 = scmp.lt.s32.totalorder %s247, 3
        %s249 = scalar_select %p248, %s247, 3
        %s250 = scalar_lea.vmem %s5, %s249
        %s251 = smul.u32 2, %s18
        %s252 = smul.u32 2, %s18
        %p253 = scmp.lt.s32.totalorder %s252, 3
        %s254 = scalar_select %p253, %s252, 3
        %s255 = scalar_lea.vmem %s5, %s254
        %s256 = smul.u32 2, %s18
        %v257 = vld [vmem:[%s1] sm:$0xff]
        %v258 = vld [vmem:[%s1 + $0x8] sm:$0xff]
        %v259 = vld [vmem:[%s1 + $0x10] sm:$0xff]
        %v260 = vld [vmem:[%s1 + $0x18] sm:$0xff]
        %v261 = vld [vmem:[%s227] sm:$0xff]
        %v262 = vld [vmem:[%s227 + $0x8] sm:$0xff]
        %v263 = vld [vmem:[%s227 + $0x10] sm:$0xff]
        %v264 = vld [vmem:[%s227 + $0x18] sm:$0xff]
        %v265 = vld [vmem:[%s227 + $0x20] sm:$0xff]
        %v266 = vld [vmem:[%s227 + $0x28] sm:$0xff]
        %v267 = vld [vmem:[%s2] sm:$0xff]
        %v268 = vld [vmem:[%s2 + $0x8] sm:$0xff]
        %v269 = vld [vmem:[%s2 + $0x10] sm:$0xff]
        %v270 = vld [vmem:[%s2 + $0x18] sm:$0xff]
        %272 = vset.pattern.permute.xlu0 0
        %273 = vperm.xlu0 %272, %v267
        %v274 = vpop.permute.xlu0 %273
        %277 = vset.pattern.permute.xlu0 0
        %278 = vperm.xlu0 %277, %v268
        %v279 = vpop.permute.xlu0 %278
        %282 = vset.pattern.permute.xlu0 0
        %283 = vperm.xlu0 %282, %v269
        %v284 = vpop.permute.xlu0 %283
        %287 = vset.pattern.permute.xlu0 0
        %288 = vperm.xlu0 %287, %v270
        %v289 = vpop.permute.xlu0 %288
        %vm291 = vcmask 195584
        %v293 = vsel %vm291, %v257, 0
        %v296 = vsel %vm291, %v258, 0
        %v299 = vsel %vm291, %v259, 0
        %v302 = vsel %vm291, %v260, 0
        %304 = vmatpush.msra.mxu0 0.0
        %305 = vmatpush.msra.mxu0 0.0
        %306 = vmatpush.msra.mxu0 0.0
        %307 = vmatpush.msra.mxu0 0.0
        %308 = vmatpush.msra.mxu0 0.0
        %309 = vmatpush.msra.mxu0 0.0
        %310 = vmatpush.msra.mxu0 0.0
        %311 = vmatpush.msra.mxu0 0.0
        %312 = vmatpush.msra.mxu0 0.0
        %313 = vmatpush.msra.mxu0 0.0
        %314 = vmatpush.msra.mxu0 0.0
        %315 = vmatpush.msra.mxu0 0.0
        %316 = vmatpush.msra.mxu0 0.0
        %317 = vmatpush.msra.mxu0 %v265
        %318 = vmatpush.msra.mxu0 %v263
        %319 = vmatpush.msra.mxu0 %v261
        %320 = vmatmul.f32.gmra.mxu0 %v293
        %v321 = vpop.f32.mrf.mxu0
        %v322 = vadd.f32 %v274, %v321
        %323 = vmatmul.f32.gmra.mxu0 %v296
        %v324 = vpop.f32.mrf.mxu0
        %v325 = vadd.f32 %v279, %v324
        %326 = vmatmul.f32.gmra.mxu0 %v299
        %v327 = vpop.f32.mrf.mxu0
        %v328 = vadd.f32 %v284, %v327
        %329 = vmatmul.f32.gmra.mxu0 %v302
        %v330 = vpop.f32.mrf.mxu0
        %v331 = vadd.f32 %v289, %v330
        %332 = vdwg.mxu0
        %333 = vmatpush.msra.mxu0 0.0
        %334 = vmatpush.msra.mxu0 0.0
        %335 = vmatpush.msra.mxu0 0.0
        %336 = vmatpush.msra.mxu0 0.0
        %337 = vmatpush.msra.mxu0 0.0
        %338 = vmatpush.msra.mxu0 0.0
        %339 = vmatpush.msra.mxu0 0.0
        %340 = vmatpush.msra.mxu0 0.0
        %341 = vmatpush.msra.mxu0 0.0
        %342 = vmatpush.msra.mxu0 0.0
        %343 = vmatpush.msra.mxu0 0.0
        %344 = vmatpush.msra.mxu0 0.0
        %345 = vmatpush.msra.mxu0 0.0
        %346 = vmatpush.msra.mxu0 %v266
        %347 = vmatpush.msra.mxu0 %v264
        %348 = vmatpush.msra.mxu0 %v262
        %349 = vmatmul.f32.gmra.mxu0 %v293
        %v350 = vpop.f32.mrf.mxu0
        %v351 = vadd.f32 %v274, %v350
        %352 = vmatmul.f32.gmra.mxu0 %v296
        %v353 = vpop.f32.mrf.mxu0
        %v354 = vadd.f32 %v279, %v353
        %355 = vmatmul.f32.gmra.mxu0 %v299
        %v356 = vpop.f32.mrf.mxu0
        %v357 = vadd.f32 %v284, %v356
        %358 = vmatmul.f32.gmra.mxu0 %v302
        %v359 = vpop.f32.mrf.mxu0
        %v360 = vadd.f32 %v289, %v359
        %361 = vdwg.mxu0
        %v362 = vmax.f32 %v322, 0.0
        %v363 = vmax.f32 %v351, 0.0
        %v364 = vmax.f32 %v325, 0.0
        %v365 = vmax.f32 %v354, 0.0
        %v366 = vmax.f32 %v328, 0.0
        %v367 = vmax.f32 %v357, 0.0
        %v368 = vmax.f32 %v331, 0.0
        %v369 = vmax.f32 %v360, 0.0
        %v370 = vld [vmem:[%s3] sm:$0xff]
        %v371 = vld [vmem:[%s3 + $0x8] sm:$0xff]
        %v372 = vld [vmem:[%s3 + $0x10] sm:$0xff]
        %v373 = vld [vmem:[%s3 + $0x18] sm:$0xff]
        %375 = vset.pattern.permute.xlu0 0
        %376 = vperm.xlu0 %375, %v370
        %v377 = vpop.permute.xlu0 %376
        %380 = vset.pattern.permute.xlu0 0
        %381 = vperm.xlu0 %380, %v371
        %v382 = vpop.permute.xlu0 %381
        %385 = vset.pattern.permute.xlu0 0
        %386 = vperm.xlu0 %385, %v372
        %v387 = vpop.permute.xlu0 %386
        %390 = vset.pattern.permute.xlu0 0
        %391 = vperm.xlu0 %390, %v373
        %v392 = vpop.permute.xlu0 %391
        %v394 = vmul.f32 %v362, %v377
        %v395 = vmul.f32 %v363, %v377
        %v396 = vmul.f32 %v364, %v382
        %v397 = vmul.f32 %v365, %v382
        %v398 = vmul.f32 %v366, %v387
        %v399 = vmul.f32 %v367, %v387
        %v400 = vmul.f32 %v368, %v392
        %v401 = vmul.f32 %v369, %v392
        %v402 = vadd.f32 %v394, %v396
        %v403 = vadd.f32 %v402, %v398
        %v404 = vadd.f32 %v403, %v400
        %v405 = vrot.slane %v404, 4
        %v406 = vadd.f32 %v404, %v405
        %v407 = vrot.slane %v406, 2
        %v408 = vadd.f32 %v406, %v407
        %v409 = vrot.slane %v408, 1
        %v410 = vadd.f32 %v408, %v409
        %v411 = vadd.f32 %v395, %v397
        %v412 = vadd.f32 %v411, %v399
        %v413 = vadd.f32 %v412, %v401
        %v414 = vrot.slane %v413, 4
        %v415 = vadd.f32 %v413, %v414
        %v416 = vrot.slane %v415, 2
        %v417 = vadd.f32 %v415, %v416
        %v418 = vrot.slane %v417, 1
        %v419 = vadd.f32 %v417, %v418
        %v420 = vld [vmem:[#allocation2] sm:$0x1]
        %422 = vset.pattern.permute.xlu0 0
        %423 = vperm.xlu0 %422, %v420
        %v424 = vpop.permute.xlu0 %423
        %v426 = vperm.slane %v424, 0
        %v427 = vadd.f32 %v410, %v426
        %v428 = vadd.f32 %v419, %v426
        %v429 = vxor.u32 %v427, 2147483648
        %v430 = vxor.u32 %v428, 2147483648
        %v431 = vmul.f32 %v429, 1.442695
        %v432 = vpow.pop %v431
        %v433 = vmul.f32 %v430, 1.442695
        %v434 = vpow.pop %v433
        %v435 = vadd.f32 %v432, 1.0
        %v436 = vadd.f32 %v434, 1.0
        %v437 = vrcp.pop %v435
        %v438 = vmul.f32 %v435, %v437
        %v439 = vsub.f32 1.0, %v438
        %v440 = vmul.f32 %v437, %v439
        %v441 = vadd.f32 %v437, %v440
        %vm442 = vweird.f32 %v435
        %vm443 = vweird.f32 %v437
        %vm444 = vmor %vm442, %vm443
        %v445 = vsel %vm444, %v437, %v441
        %v446 = vand.u32 2147483647, %v435
        %vm447 = vcmp.eq.f32.partialorder %v446, 8.507059e+37
        %v448 = vand.u32 %v435, 2147483648
        %v449 = vor.u32 1.1754944e-38, %v448
        %v450 = vsel %vm447, %v449, %v445
        %v451 = vmul.f32 1.0, %v450
        %v452 = vrcp.pop %v436
        %v453 = vmul.f32 %v436, %v452
        %v454 = vsub.f32 1.0, %v453
        %v455 = vmul.f32 %v452, %v454
        %v456 = vadd.f32 %v452, %v455
        %vm457 = vweird.f32 %v436
        %vm458 = vweird.f32 %v452
        %vm459 = vmor %vm457, %vm458
        %v460 = vsel %vm459, %v452, %v456
        %v461 = vand.u32 2147483647, %v436
        %vm462 = vcmp.eq.f32.partialorder %v461, 8.507059e+37
        %v463 = vand.u32 %v436, 2147483648
        %v464 = vor.u32 1.1754944e-38, %v463
        %v465 = vsel %vm462, %v464, %v460
        %v466 = vmul.f32 1.0, %v465
        %v469 = vrot.slane %v466, 7
        %vm470 = vcmask 1040384
        %v471 = vsel %vm470, %v451, %v469
        %v473 = vlaneseq
        %vm474 = vcmp.ge.s32.totalorder %v473, 0
        %vm475 = vcmp.lt.s32.totalorder %v473, 256
        %vm476 = vmand %vm474, %vm475
        %477 = vst.msk [vmem:[%s255] sm:$0x3] %vm476, %v471
        %s478 = smul.u32 2, %s18
        %p479 = scmp.lt.s32.totalorder %s478, 3
        %s480 = scalar_select %p479, %s478, 3
        %s481 = scalar_lea.vmem %s5, %s480
        // Predicated region
        $region64: #{agent_forward.1} parent=58 // pred_check
          %p482 = pneg %p146
        $region65: #{agent_forward.1} parent=58 // pred_check_branch
          %484 = sbr.rel (%p482) target = $region67
        $region66: #{agent_forward.1} parent=58 // pred_region
          %s485 = smul.u32 2, %s18
        $region67: #{agent_forward.1} parent=58 // pred_fallthru
          _
      $region59: #{agent_forward.1} parent=5 // pred_fallthru
        _
      %p486 = scmp.le.s32.totalorder 2, %s13
      // Predicated region
      $region68: #{agent_forward.1} parent=5 // pred_check
        %p487 = pneg %p486
      $region69: #{agent_forward.1} parent=5 // pred_check_branch
        %489 = sbr.rel (%p487) target = $region71
      $region70: #{agent_forward.1} parent=5 // pred_region
        %s490 = ssub.s32 %s13, 2
        // Predicated region
        $region72: #{agent_forward.1} parent=70 // pred_check
          %p491 = pneg %p152
        $region73: #{agent_forward.1} parent=70 // pred_check_branch
          %493 = sbr.rel (%p491) target = $region75
        $region74: #{agent_forward.1} parent=70 // pred_region
          %s494 = smul.u32 2, %s19
          %p495 = scmp.lt.s32.totalorder %s494, 3
          %s496 = scalar_select %p495, %s494, 3
          %s497 = scalar_lea.vmem %s5, %s496
        $region75: #{agent_forward.1} parent=70 // pred_fallthru
          _
      $region71: #{agent_forward.1} parent=5 // pred_fallthru
        _
    $region6: #{agent_forward.1} parent=1 // loop_footer
      %s17 = sadd.s32 1, %s13
    $region7: #{agent_forward.1} parent=1 // loop_footer_branch
      %12 = sbr.rel target = $region3
    $region8: #{agent_forward.1} parent=1 // loop_exit
      _

</llo_original>
